<compile_context>
chip_gen: v5e
topology: v5e:2x2
jax: 0.10.0
libtpu: 0.0.40
codegen_flags: <defaults>
</compile_context>

<pallas_src>
import jax
import jax.numpy as jnp
from jax.experimental import pallas as pl
from jax.experimental.pallas import tpu as pltpu

LANE = 128          # TPU lane width (last-dim granularity)
SUBLANE = 8         # sublane granularity (f32)
TILE_B_MAX = 512    # batch tile on the lane axis; big tiles amortize per-step overhead


def value_net_kernel(xT_ref, w1T_ref, b1_ref, w2T_ref, b2_ref, o_ref):
    # fc1: (H_pad, S_pad) @ (S_pad, TILE_B) -> (H_pad, TILE_B); bf16 MXU, f32 acc.
    h = jnp.dot(w1T_ref[...], xT_ref[...], preferred_element_type=jnp.float32)
    # bias + ReLU in f32 (v5e-safe elementwise epilogue).
    h = jnp.maximum(h + b1_ref[...], 0.0)
    # fc2: (1, H_pad) @ (H_pad, TILE_B) -> (1, TILE_B); lane-dense result row.
    v = jnp.dot(w2T_ref[...], h.astype(w2T_ref.dtype),
                preferred_element_type=jnp.float32)
    o_ref[...] = (v + b2_ref[0, 0]).astype(o_ref.dtype)


def value_net_forward(x, w1, b1, w2, b2):
    """x: (B, state_dim) f32, w1: (S, H), b1: (H,), w2: (H, 1), b2: (1,) -> (B, 1) f32."""
    B, S = x.shape
    H = w1.shape[1]

    # Pad to native TPU granularity.
    S_pad = pl.cdiv(S, SUBLANE) * SUBLANE
    H_pad = pl.cdiv(H, LANE) * LANE
    B_lane = pl.cdiv(B, LANE) * LANE
    tile_b = min(TILE_B_MAX, B_lane)
    B_pad = pl.cdiv(B, tile_b) * tile_b
    grid = (B_pad // tile_b,)

    # Transpose + zero-pad; matmul operands in bf16 (MXU-native), biases in f32.
    xT = jnp.pad(x.astype(jnp.bfloat16).T, ((0, S_pad - S), (0, B_pad - B)))
    w1T = jnp.pad(w1.astype(jnp.bfloat16).T, ((0, H_pad - H), (0, S_pad - S)))
    b1c = jnp.pad(b1.astype(jnp.float32).reshape(-1, 1), ((0, H_pad - H), (0, 0)))
    w2T = jnp.pad(w2.astype(jnp.bfloat16).T, ((0, 0), (0, H_pad - H)))
    b2s = b2.astype(jnp.float32).reshape(1, 1)

    outT = pl.pallas_call(
        value_net_kernel,
        out_shape=jax.ShapeDtypeStruct((1, B_pad), jnp.float32),
        grid=grid,
        in_specs=[
            pl.BlockSpec((S_pad, tile_b), lambda i: (0, i)),    # xT: batch-tiled, pipelined
            pl.BlockSpec((H_pad, S_pad), lambda i: (0, 0)),     # w1T: VMEM-resident
            pl.BlockSpec((H_pad, 1), lambda i: (0, 0)),         # b1 column (broadcast over lanes)
            pl.BlockSpec((1, H_pad), lambda i: (0, 0)),         # w2T row: VMEM-resident
            pl.BlockSpec(memory_space=pltpu.MemorySpace.SMEM),  # b2 scalar in SMEM
        ],
        out_specs=pl.BlockSpec((1, tile_b), lambda i: (0, i)),  # lane-dense writeback
        compiler_params=pltpu.CompilerParams(
            dimension_semantics=("parallel",),                  # megacore sharding on v7x
        ),
    )(xT, w1T, b1c, w2T, b2s)

    # Drop batch padding and return PyTorch-shaped (B, 1).
    return outT[0, :B].reshape(B, 1)


def init_params(key, state_dim, hidden_dim):
    """Deterministic init mimicking nn.Linear default (U(-1/sqrt(fan_in), +))."""
    k1, k2, k3, k4 = jax.random.split(key, 4)
    bound1 = 1.0 / jnp.sqrt(state_dim)
    bound2 = 1.0 / jnp.sqrt(hidden_dim)
    w1 = jax.random.uniform(k1, (state_dim, hidden_dim), jnp.float32, -bound1, bound1)
    b1 = jax.random.uniform(k2, (hidden_dim,), jnp.float32, -bound1, bound1)
    w2 = jax.random.uniform(k3, (hidden_dim, 1), jnp.float32, -bound2, bound2)
    b2 = jax.random.uniform(k4, (1,), jnp.float32, -bound2, bound2)
    return w1, b1, w2, b2


def _reference(x, w1, b1, w2, b2):
    return jnp.maximum(x @ w1 + b1, 0.0) @ w2 + b2


if __name__ == "__main__":
    key = jax.random.PRNGKey(0)
    state_dim, hidden_dim = 4, 32
    kx, kp, kx2 = jax.random.split(key, 3)
    w1, b1, w2, b2 = init_params(kp, state_dim, hidden_dim)

    # Small test (single grid step, tile_b = 128).
    batch = 8
    x = jax.random.normal(kx, (batch, state_dim), jnp.float32)
    out = jax.block_until_ready(value_net_forward(x, w1, b1, w2, b2))
    ref = _reference(x, w1, b1, w2, b2)
    assert out.shape == (batch, 1)
    # bf16 matmul inputs -> relaxed tolerance vs. the f32 reference.
    assert jnp.allclose(out, ref, atol=3e-2, rtol=3e-2), float(jnp.max(jnp.abs(out - ref)))

    # Larger, non-multiple batch: exercises multi-step grid + batch padding path.
    batch2 = 700
    x2 = jax.random.normal(kx2, (batch2, state_dim), jnp.float32)
    out2 = jax.block_until_ready(value_net_forward(x2, w1, b1, w2, b2))
    ref2 = _reference(x2, w1, b1, w2, b2)
    assert out2.shape == (batch2, 1)
    assert jnp.allclose(out2, ref2, atol=3e-2, rtol=3e-2), float(jnp.max(jnp.abs(out2 - ref2)))

    print("KERNEL_OK")
</pallas_src>

<mosaic_0001>
module attributes {stable_mosaic.version = 11 : i64} {
  func.func @value_net_kernel(%arg0: i32, %arg1: memref<8x128xbf16, #tpu.memory_space<vmem>>, %arg2: memref<128x8xbf16, #tpu.memory_space<vmem>>, %arg3: memref<128x1xf32, #tpu.memory_space<vmem>>, %arg4: memref<1x128xbf16, #tpu.memory_space<vmem>>, %arg5: memref<1x1xf32, #tpu.memory_space<smem>>, %arg6: memref<1x128xf32, #tpu.memory_space<vmem>>) attributes {dimension_semantics = [#tpu.dimension_semantics<parallel>], iteration_bounds = array<i64: 1>, scalar_prefetch = 0 : i64, scratch_operands = 0 : i64, tpu.core_type = #tpu.core_type<tc>, window_params = [{transform_indices = @transform_0, window_bounds = array<i64: 8, 128>}, {pipeline_mode = #tpu.pipeline_mode<synchronous>, transform_indices = @transform_1, window_bounds = array<i64: 128, 8>}, {pipeline_mode = #tpu.pipeline_mode<synchronous>, transform_indices = @transform_2, window_bounds = array<i64: 128, 1>}, {pipeline_mode = #tpu.pipeline_mode<synchronous>, transform_indices = @transform_3, window_bounds = array<i64: 1, 128>}, {transform_indices = @transform_4, window_bounds = array<i64: 1, 1>}, {transform_indices = @transform_5, window_bounds = array<i64: 1, 128>}]} {
    %c0 = arith.constant 0 : index
    %c0_0 = arith.constant 0 : index
    %0 = vector.load %arg2[%c0, %c0_0] : memref<128x8xbf16, #tpu.memory_space<vmem>>, vector<128x8xbf16>
    %c0_1 = arith.constant 0 : index
    %c0_2 = arith.constant 0 : index
    %1 = vector.load %arg1[%c0_1, %c0_2] : memref<8x128xbf16, #tpu.memory_space<vmem>>, vector<8x128xbf16>
    %cst = arith.constant dense<0.000000e+00> : vector<128x128xf32>
    %2 = tpu.matmul %0, %1, %cst {dimension_numbers = #tpu.dot_dimension_numbers<[1], [0], [0], [1], [0, 0, 1, 1], [], []>} : vector<128x8xbf16>, vector<8x128xbf16>, vector<128x128xf32> -> vector<128x128xf32>
    %c0_3 = arith.constant 0 : index
    %c0_4 = arith.constant 0 : index
    %3 = vector.load %arg3[%c0_3, %c0_4] : memref<128x1xf32, #tpu.memory_space<vmem>>, vector<128x1xf32>
    %4 = vector.broadcast %3 : vector<128x1xf32> to vector<128x128xf32>
    %5 = arith.addf %2, %4 : vector<128x128xf32>
    %cst_5 = arith.constant 0.000000e+00 : f32
    %6 = vector.broadcast %cst_5 : f32 to vector<128x128xf32>
    %7 = arith.maximumf %5, %6 : vector<128x128xf32>
    %c0_6 = arith.constant 0 : index
    %c0_7 = arith.constant 0 : index
    %8 = vector.load %arg4[%c0_6, %c0_7] : memref<1x128xbf16, #tpu.memory_space<vmem>>, vector<1x128xbf16>
    %9 = arith.truncf %7 : vector<128x128xf32> to vector<128x128xbf16>
    %cst_8 = arith.constant dense<0.000000e+00> : vector<1x128xf32>
    %10 = tpu.matmul %8, %9, %cst_8 {dimension_numbers = #tpu.dot_dimension_numbers<[1], [0], [0], [1], [0, 0, 1, 1], [], []>} : vector<1x128xbf16>, vector<128x128xbf16>, vector<1x128xf32> -> vector<1x128xf32>
    %c0_9 = arith.constant 0 : index
    %c0_10 = arith.constant 0 : index
    %11 = memref.load %arg5[%c0_9, %c0_10] : memref<1x1xf32, #tpu.memory_space<smem>>
    %12 = vector.broadcast %11 : f32 to vector<1x128xf32>
    %13 = arith.addf %10, %12 : vector<1x128xf32>
    %c0_11 = arith.constant 0 : index
    %c0_12 = arith.constant 0 : index
    %14 = vector.load %arg6[%c0_11, %c0_12] : memref<1x128xf32, #tpu.memory_space<vmem>>, vector<1x128xf32>
    tpu.vector_store %arg6[%c0_11, %c0_12], %13 {strides = array<i32>} : memref<1x128xf32, #tpu.memory_space<vmem>>, vector<1x128xf32>,
    return
  }
  func.func @transform_0(%arg0: i32) -> (i32, i32) {
    %c0_i32 = arith.constant 0 : i32
    %c0_i32_0 = arith.constant 0 : i32
    return %c0_i32, %arg0 : i32, i32
  }
  func.func @transform_1(%arg0: i32) -> (i32, i32) {
    %c0_i32 = arith.constant 0 : i32
    %c0_i32_0 = arith.constant 0 : i32
    %c0_i32_1 = arith.constant 0 : i32
    return %c0_i32, %c0_i32_0 : i32, i32
  }
  func.func @transform_2(%arg0: i32) -> (i32, i32) {
    %c0_i32 = arith.constant 0 : i32
    %c0_i32_0 = arith.constant 0 : i32
    %c0_i32_1 = arith.constant 0 : i32
    return %c0_i32, %c0_i32_0 : i32, i32
  }
  func.func @transform_3(%arg0: i32) -> (i32, i32) {
    %c0_i32 = arith.constant 0 : i32
    %c0_i32_0 = arith.constant 0 : i32
    %c0_i32_1 = arith.constant 0 : i32
    return %c0_i32, %c0_i32_0 : i32, i32
  }
  func.func @transform_4(%arg0: i32) -> (i32, i32) {
    %c0_i32 = arith.constant 0 : i32
    %c0_i32_0 = arith.constant 0 : i32
    %c0_i32_1 = arith.constant 0 : i32
    return %c0_i32, %c0_i32_0 : i32, i32
  }
  func.func @transform_5(%arg0: i32) -> (i32, i32) {
    %c0_i32 = arith.constant 0 : i32
    %c0_i32_0 = arith.constant 0 : i32
    return %c0_i32, %arg0 : i32, i32
  }
}

</mosaic_0001>

<llo_original>
// kernel: tpu_custom_call.1
$region0: #{tpu_custom_call.1}
  #allocation0 [shape = 'u32[]', space=smem, size = 0x4, offset = 0x4, fixed_abs, tag = 'smem constant byte address 0x4 - core index']
  #allocation1 [shape = 'u32[72,128]{1,0:T(1,128)}', space=vmem, size = 0x9000, scoped, tag = 'internal scratch']
  #allocation2 [shape = 'f32[1,1]{1,0:T(1,128)S(6)}', space=smem, size = 0x200, scoped, tag = 'scoped memory for tpu_custom_call.1']
  %s0 = inlined_call_operand.vmem [shape: bf16[8,128], index: 0, kind: input, shape index: {}]
  %s1 = inlined_call_operand.vmem [shape: bf16[128,8], index: 1, kind: input, shape index: {}]
  %s2 = inlined_call_operand.vmem [shape: f32[128,1], index: 2, kind: input, shape index: {}]
  %s3 = inlined_call_operand.vmem [shape: bf16[1,128], index: 3, kind: input, shape index: {}]
  %s4 = inlined_call_operand.<no memory space> [shape: f32[1,1], index: 4, kind: input, shape index: {}]
  %s5 = inlined_call_operand.hbm [shape: f32[1,128], index: 5, kind: output, shape index: {}]
  %s6 = sld [smem:[#allocation0]]
  $region30: #{tpu_custom_call.1} parent=0
    _
  %s8 = ssub.s32 1, %s6
  %s9 = scalar_select 0, %s8, %s6
  %10 = sst [smem:[#allocation2]] %s4
  $region1: #{tpu_custom_call.1} parent=0
    #allocation3 [shape = 'u8[512]{0}', space=vmem, size = 0x400, scoped, tag = 'output window, operand 0, single buffered']
    #allocation4 [shape = 's32[1]{0}', space=sflag, size = 0x4, scoped, tag = 'scoped memory for tpu_custom_call.1']
    %11 = vsyncpa [#allocation4], 0
    // Predicated region
    $region2: #{tpu_custom_call.1} parent=1 // pred_check
      _
    $region3: #{tpu_custom_call.1} parent=1 // pred_check_branch
      %13 = sbr.rel (0) target = $region5
    $region4: #{tpu_custom_call.1} parent=1 // pred_region
      _
    $region5: #{tpu_custom_call.1} parent=1 // pred_fallthru
      _
    // Predicated region
    $region6: #{tpu_custom_call.1} parent=1 // pred_check
      _
    $region7: #{tpu_custom_call.1} parent=1 // pred_check_branch
      %15 = sbr.rel (0) target = $region9
    $region8: #{tpu_custom_call.1} parent=1 // pred_region
      _
    $region9: #{tpu_custom_call.1} parent=1 // pred_fallthru
      _
    // Predicated region
    $region10: #{tpu_custom_call.1} parent=1 // pred_check
      _
    $region11: #{tpu_custom_call.1} parent=1 // pred_check_branch
      %17 = sbr.rel (0) target = $region13
    $region12: #{tpu_custom_call.1} parent=1 // pred_region
      _
    $region13: #{tpu_custom_call.1} parent=1 // pred_fallthru
      _
    // Predicated region
    $region14: #{tpu_custom_call.1} parent=1 // pred_check
      _
    $region15: #{tpu_custom_call.1} parent=1 // pred_check_branch
      %19 = sbr.rel (0) target = $region17
    $region16: #{tpu_custom_call.1} parent=1 // pred_region
      _
    $region17: #{tpu_custom_call.1} parent=1 // pred_fallthru
      _
    // Predicated region
    $region18: #{tpu_custom_call.1} parent=1 // pred_check
      _
    $region19: #{tpu_custom_call.1} parent=1 // pred_check_branch
      %21 = sbr.rel (0) target = $region21
    $region20: #{tpu_custom_call.1} parent=1 // pred_region
      _
    $region21: #{tpu_custom_call.1} parent=1 // pred_fallthru
      _
    %v23 = vld [vmem:[%s1] sm:$0xf]
    %v24 = vld [vmem:[%s1 + $0x4] sm:$0xf]
    %v25 = vld [vmem:[%s1 + $0x8] sm:$0xf]
    %v26 = vld [vmem:[%s1 + $0xc] sm:$0xf]
    %v27 = vld [vmem:[%s1 + $0x10] sm:$0xf]
    %v28 = vld [vmem:[%s1 + $0x14] sm:$0xf]
    %v29 = vld [vmem:[%s1 + $0x18] sm:$0xf]
    %v30 = vld [vmem:[%s1 + $0x1c] sm:$0xf]
    %v31 = vld [vmem:[%s1 + $0x20] sm:$0xf]
    %v32 = vld [vmem:[%s1 + $0x24] sm:$0xf]
    %v33 = vld [vmem:[%s1 + $0x28] sm:$0xf]
    %v34 = vld [vmem:[%s1 + $0x2c] sm:$0xf]
    %v35 = vld [vmem:[%s1 + $0x30] sm:$0xf]
    %v36 = vld [vmem:[%s1 + $0x34] sm:$0xf]
    %v37 = vld [vmem:[%s1 + $0x38] sm:$0xf]
    %v38 = vld [vmem:[%s1 + $0x3c] sm:$0xf]
    %v39 = vld [vmem:[%s0] sm:$0xf]
    %v40 = vld [vmem:[%s2] sm:$0xff]
    %v41 = vld [vmem:[%s2 + $0x8] sm:$0xff]
    %v42 = vld [vmem:[%s2 + $0x10] sm:$0xff]
    %v43 = vld [vmem:[%s2 + $0x18] sm:$0xff]
    %v44 = vld [vmem:[%s2 + $0x20] sm:$0xff]
    %v45 = vld [vmem:[%s2 + $0x28] sm:$0xff]
    %v46 = vld [vmem:[%s2 + $0x30] sm:$0xff]
    %v47 = vld [vmem:[%s2 + $0x38] sm:$0xff]
    %v48 = vld [vmem:[%s2 + $0x40] sm:$0xff]
    %v49 = vld [vmem:[%s2 + $0x48] sm:$0xff]
    %v50 = vld [vmem:[%s2 + $0x50] sm:$0xff]
    %v51 = vld [vmem:[%s2 + $0x58] sm:$0xff]
    %v52 = vld [vmem:[%s2 + $0x60] sm:$0xff]
    %v53 = vld [vmem:[%s2 + $0x68] sm:$0xff]
    %v54 = vld [vmem:[%s2 + $0x70] sm:$0xff]
    %v55 = vld [vmem:[%s2 + $0x78] sm:$0xff]
    %57 = vset.pattern.permute.xlu0 0
    %58 = vperm.xlu0 %57, %v40
    %v59 = vpop.permute.xlu0 %58
    %62 = vset.pattern.permute.xlu0 0
    %63 = vperm.xlu0 %62, %v41
    %v64 = vpop.permute.xlu0 %63
    %67 = vset.pattern.permute.xlu0 0
    %68 = vperm.xlu0 %67, %v42
    %v69 = vpop.permute.xlu0 %68
    %72 = vset.pattern.permute.xlu0 0
    %73 = vperm.xlu0 %72, %v43
    %v74 = vpop.permute.xlu0 %73
    %77 = vset.pattern.permute.xlu0 0
    %78 = vperm.xlu0 %77, %v44
    %v79 = vpop.permute.xlu0 %78
    %82 = vset.pattern.permute.xlu0 0
    %83 = vperm.xlu0 %82, %v45
    %v84 = vpop.permute.xlu0 %83
    %87 = vset.pattern.permute.xlu0 0
    %88 = vperm.xlu0 %87, %v46
    %v89 = vpop.permute.xlu0 %88
    %92 = vset.pattern.permute.xlu0 0
    %93 = vperm.xlu0 %92, %v47
    %v94 = vpop.permute.xlu0 %93
    %97 = vset.pattern.permute.xlu0 0
    %98 = vperm.xlu0 %97, %v48
    %v99 = vpop.permute.xlu0 %98
    %102 = vset.pattern.permute.xlu0 0
    %103 = vperm.xlu0 %102, %v49
    %v104 = vpop.permute.xlu0 %103
    %107 = vset.pattern.permute.xlu0 0
    %108 = vperm.xlu0 %107, %v50
    %v109 = vpop.permute.xlu0 %108
    %112 = vset.pattern.permute.xlu0 0
    %113 = vperm.xlu0 %112, %v51
    %v114 = vpop.permute.xlu0 %113
    %117 = vset.pattern.permute.xlu0 0
    %118 = vperm.xlu0 %117, %v52
    %v119 = vpop.permute.xlu0 %118
    %122 = vset.pattern.permute.xlu0 0
    %123 = vperm.xlu0 %122, %v53
    %v124 = vpop.permute.xlu0 %123
    %127 = vset.pattern.permute.xlu0 0
    %128 = vperm.xlu0 %127, %v54
    %v129 = vpop.permute.xlu0 %128
    %132 = vset.pattern.permute.xlu0 0
    %133 = vperm.xlu0 %132, %v55
    %v134 = vpop.permute.xlu0 %133
    %v152 = vunpack.c.l.b16 %v23
    %v153 = vunpack.c.l.b16 %v24
    %v154 = vunpack.c.l.b16 %v25
    %v155 = vunpack.c.l.b16 %v26
    %v156 = vunpack.c.l.b16 %v27
    %v157 = vunpack.c.l.b16 %v28
    %v158 = vunpack.c.l.b16 %v29
    %v159 = vunpack.c.l.b16 %v30
    %v160 = vunpack.c.l.b16 %v31
    %v161 = vunpack.c.l.b16 %v32
    %v162 = vunpack.c.l.b16 %v33
    %v163 = vunpack.c.l.b16 %v34
    %v164 = vunpack.c.l.b16 %v35
    %v165 = vunpack.c.l.b16 %v36
    %v166 = vunpack.c.l.b16 %v37
    %v167 = vunpack.c.l.b16 %v38
    %v168 = vpack.c.b16 %v153, %v152
    %v169 = vpack.c.b16 %v155, %v154
    %v170 = vpack.c.b16 %v157, %v156
    %v171 = vpack.c.b16 %v159, %v158
    %v172 = vpack.c.b16 %v161, %v160
    %v173 = vpack.c.b16 %v163, %v162
    %v174 = vpack.c.b16 %v165, %v164
    %v175 = vpack.c.b16 %v167, %v166
    %vm176 = vcmask 64512
    %v178 = vsel %vm176, %v168, 0
    %v181 = vsel %vm176, %v169, 0
    %v184 = vsel %vm176, %v170, 0
    %v187 = vsel %vm176, %v171, 0
    %v190 = vsel %vm176, %v172, 0
    %v193 = vsel %vm176, %v173, 0
    %v196 = vsel %vm176, %v174, 0
    %v199 = vsel %vm176, %v175, 0
    %vm201 = vcmask 1043456
    %v203 = vsel %vm201, %v39, 0
    %205 = vmatpush.bf16.msra.mxu0 0
    %206 = vmatpush.bf16.msra.mxu0 0
    %207 = vmatpush.bf16.msra.mxu0 0
    %208 = vmatpush.bf16.msra.mxu0 0
    %209 = vmatpush.bf16.msra.mxu0 0
    %210 = vmatpush.bf16.msra.mxu0 0
    %211 = vmatpush.bf16.msra.mxu0 0
    %212 = vmatpush.bf16.msra.mxu0 %v203
    %213 = vmatmul.bf16.gmra.mxu0 %v178
    %v214 = vpop.f32.mrf.mxu0
    %v215 = vadd.f32 %v59, %v214
    %v216 = vpop.f32.mrf.mxu0
    %v217 = vadd.f32 %v64, %v216
    %218 = vmatmul.bf16.gmra.mxu0 %v181
    %v219 = vpop.f32.mrf.mxu0
    %v220 = vadd.f32 %v69, %v219
    %v221 = vpop.f32.mrf.mxu0
    %v222 = vadd.f32 %v74, %v221
    %223 = vmatmul.bf16.gmra.mxu0 %v184
    %v224 = vpop.f32.mrf.mxu0
    %v225 = vadd.f32 %v79, %v224
    %v226 = vpop.f32.mrf.mxu0
    %v227 = vadd.f32 %v84, %v226
    %228 = vmatmul.bf16.gmra.mxu0 %v187
    %v229 = vpop.f32.mrf.mxu0
    %v230 = vadd.f32 %v89, %v229
    %v231 = vpop.f32.mrf.mxu0
    %v232 = vadd.f32 %v94, %v231
    %233 = vmatmul.bf16.gmra.mxu0 %v190
    %v234 = vpop.f32.mrf.mxu0
    %v235 = vadd.f32 %v99, %v234
    %v236 = vpop.f32.mrf.mxu0
    %v237 = vadd.f32 %v104, %v236
    %238 = vmatmul.bf16.gmra.mxu0 %v193
    %v239 = vpop.f32.mrf.mxu0
    %v240 = vadd.f32 %v109, %v239
    %v241 = vpop.f32.mrf.mxu0
    %v242 = vadd.f32 %v114, %v241
    %243 = vmatmul.bf16.gmra.mxu0 %v196
    %v244 = vpop.f32.mrf.mxu0
    %v245 = vadd.f32 %v119, %v244
    %v246 = vpop.f32.mrf.mxu0
    %v247 = vadd.f32 %v124, %v246
    %248 = vmatmul.bf16.gmra.mxu0 %v199
    %v249 = vpop.f32.mrf.mxu0
    %v250 = vadd.f32 %v129, %v249
    %v251 = vpop.f32.mrf.mxu0
    %v252 = vadd.f32 %v134, %v251
    %253 = vdwg.mxu0
    %v254 = vmax.f32 %v215, 0.0
    %v255 = vmax.f32 %v217, 0.0
    %v256 = vmax.f32 %v220, 0.0
    %v257 = vmax.f32 %v222, 0.0
    %v258 = vmax.f32 %v225, 0.0
    %v259 = vmax.f32 %v227, 0.0
    %v260 = vmax.f32 %v230, 0.0
    %v261 = vmax.f32 %v232, 0.0
    %v262 = vmax.f32 %v235, 0.0
    %v263 = vmax.f32 %v237, 0.0
    %v264 = vmax.f32 %v240, 0.0
    %v265 = vmax.f32 %v242, 0.0
    %v266 = vmax.f32 %v245, 0.0
    %v267 = vmax.f32 %v247, 0.0
    %v268 = vmax.f32 %v250, 0.0
    %v269 = vmax.f32 %v252, 0.0
    %v270 = vld [vmem:[%s3] sm:$0x1]
    %v271 = vpack.c.bf16 %v255, %v254
    %v272 = vpack.c.bf16 %v257, %v256
    %v273 = vpack.c.bf16 %v259, %v258
    %v274 = vpack.c.bf16 %v261, %v260
    %v275 = vpack.c.bf16 %v263, %v262
    %v276 = vpack.c.bf16 %v265, %v264
    %v277 = vpack.c.bf16 %v267, %v266
    %v278 = vpack.c.bf16 %v269, %v268
    %s279 = sld [smem:[#allocation2]]
    %v280 = vstv %s279
    %281 = vmatpush.bf16.msra.mxu0 %v278
    %282 = vmatpush.bf16.msra.mxu0 %v277
    %283 = vmatpush.bf16.msra.mxu0 %v276
    %284 = vmatpush.bf16.msra.mxu0 %v275
    %285 = vmatpush.bf16.msra.mxu0 %v274
    %286 = vmatpush.bf16.msra.mxu0 %v273
    %287 = vmatpush.bf16.msra.mxu0 %v272
    %288 = vmatpush.bf16.msra.mxu0 %v271
    %289 = vmatmul.bf16.gmra.mxu0 %v270
    %v290 = vpop.f32.mrf.mxu0
    %v291 = vadd.f32 %v280, %v290
    %v292 = vpop.f32.mrf.mxu0
    %293 = vdwg.mxu0
    %294 = vst [vmem:[#allocation3] sm:$0x1] %v291
    // Predicated region
    $region22: #{tpu_custom_call.1} parent=1 // pred_check
      _
    $region23: #{tpu_custom_call.1} parent=1 // pred_check_branch
      %296 = sbr.rel (0) target = $region25
    $region24: #{tpu_custom_call.1} parent=1 // pred_region
      %298 = vsyncadd [#allocation4], 0
      %s300 = sshll.u32 [#allocation3], 4
      %s301 = int_to_ptr.vmem [resolvable:$true] %s300
      %s302 = sshll.u32 %s5, 4
      %s303 = int_to_ptr.hbm [resolvable:$true] %s302
      %305 = dma.vmem_to_hbm [thread:$0]  %s301, 16, %s303, [#allocation4]
    $region25: #{tpu_custom_call.1} parent=1 // pred_fallthru
      _
    // Predicated region
    $region26: #{tpu_custom_call.1} parent=1 // pred_check
      _
    $region27: #{tpu_custom_call.1} parent=1 // pred_check_branch
      %307 = sbr.rel (0) target = $region29
    $region28: #{tpu_custom_call.1} parent=1 // pred_region
      %309 = dma.done [#allocation4], 16
    $region29: #{tpu_custom_call.1} parent=1 // pred_fallthru
      _
    %310 = vsyncpa [#allocation4], 1

</llo_original>
